<compile_context>
chip_gen: v7x
topology: tpu7x:2x2x1
jax: 0.10.0
libtpu: 0.0.40
codegen_flags: <defaults>
</compile_context>

<pallas_src>
import functools

import jax
import jax.numpy as jnp
import numpy as np
from jax.experimental import pallas as pl
from jax.experimental.pallas import tpu as pltpu

EPS = 1e-5
VMEM_LIMIT = 48 * 1024 * 1024  # explicit scoped-VMEM budget (v7x-safe)


# ----------------------------- Pallas kernels ------------------------------

def _stage1_kernel(x_ref, w_ref, y_ref, sum_ref, sq_ref):
    """conv1 (1x1) as tiled matmul; accumulate per-channel sum / sum-of-squares."""
    @pl.when(pl.program_id(0) == 0)
    def _():
        sum_ref[...] = jnp.zeros_like(sum_ref)
        sq_ref[...] = jnp.zeros_like(sq_ref)

    y = jnp.dot(x_ref[...].astype(jnp.bfloat16), w_ref[...],
                preferred_element_type=jnp.float32)
    y_ref[...] = y
    sum_ref[...] += jnp.sum(y, axis=0, keepdims=True)
    sq_ref[...] += jnp.sum(y * y, axis=0, keepdims=True)


def _stage2_kernel(h_ref, sum_ref, sq_ref, g_ref, b_ref, w_ref,
                   y_ref, osum_ref, osq_ref, pad_ref, *, H, W, C, inv_m):
    """bn1+relu (fused) -> conv2 (3x3, pad 1) as 9 shifted dots; accumulate stats."""
    n = pl.program_id(0)

    @pl.when(n == 0)
    def _():
        osum_ref[...] = jnp.zeros_like(osum_ref)
        osq_ref[...] = jnp.zeros_like(osq_ref)
        # Zero the padded scratch once: the interior is fully overwritten every
        # grid step, the halo border stays zero (== zero padding after bn+relu).
        pad_ref[...] = jnp.zeros_like(pad_ref)

    mean = sum_ref[...] * inv_m                       # (1, C)
    var = sq_ref[...] * inv_m - mean * mean
    scale = jax.lax.rsqrt(var + EPS) * g_ref[...]
    hn = jnp.maximum((h_ref[0] - mean) * scale + b_ref[...], 0.0)  # (H, W, C)

    pad_ref[1:H + 1, 1:W + 1, :] = hn                 # write interior of halo buf

    acc = jnp.zeros((H * W, C), jnp.float32)
    for kh in range(3):
        for kw in range(3):
            lhs = pad_ref[kh:kh + H, kw:kw + W, :].reshape(H * W, C)
            acc = acc + jnp.dot(lhs.astype(jnp.bfloat16), w_ref[kh * 3 + kw],
                                preferred_element_type=jnp.float32)

    y_ref[0] = acc.reshape(H, W, C)
    osum_ref[...] += jnp.sum(acc, axis=0, keepdims=True)
    osq_ref[...] += jnp.sum(acc * acc, axis=0, keepdims=True)


def _stage3_kernel(h_ref, sum_ref, sq_ref, g_ref, b_ref, w_ref,
                   y_ref, osum_ref, osq_ref, *, inv_m):
    """bn2+relu (fused) -> conv3 (1x1) tiled matmul; accumulate stats."""
    @pl.when(pl.program_id(0) == 0)
    def _():
        osum_ref[...] = jnp.zeros_like(osum_ref)
        osq_ref[...] = jnp.zeros_like(osq_ref)

    mean = sum_ref[...] * inv_m
    var = sq_ref[...] * inv_m - mean * mean
    scale = jax.lax.rsqrt(var + EPS) * g_ref[...]
    a = jnp.maximum((h_ref[...] - mean) * scale + b_ref[...], 0.0)

    y = jnp.dot(a.astype(jnp.bfloat16), w_ref[...],
                preferred_element_type=jnp.float32)
    y_ref[...] = y
    osum_ref[...] += jnp.sum(y, axis=0, keepdims=True)
    osq_ref[...] += jnp.sum(y * y, axis=0, keepdims=True)


def _stage4_kernel(y_ref, res_ref, sum_ref, sq_ref, g_ref, b_ref, o_ref, *, inv_m):
    """bn3 (fused) + residual add + relu, tiled over M (parallel)."""
    mean = sum_ref[...] * inv_m
    var = sq_ref[...] * inv_m - mean * mean
    scale = jax.lax.rsqrt(var + EPS) * g_ref[...]
    hn = (y_ref[...] - mean) * scale + b_ref[...]
    o_ref[...] = jnp.maximum(hn + res_ref[...], 0.0).astype(o_ref.dtype)


# ----------------------------- pallas_call glue -----------------------------

def _cparams(semantics):
    return pltpu.CompilerParams(dimension_semantics=semantics,
                                vmem_limit_bytes=VMEM_LIMIT)


def _choose_tile_m(m, target):
    """Largest multiple-of-8 divisor of m that is <= target (else m itself)."""
    target = max(8, (min(target, m) // 8) * 8)
    if m <= target:
        return m
    for t in range(target, 7, -8):
        if m % t == 0:
            return t
    return m


def _stage1(x2d, w_bf16, tm):
    m, cin = x2d.shape
    cout = w_bf16.shape[1]
    return pl.pallas_call(
        _stage1_kernel,
        out_shape=(jax.ShapeDtypeStruct((m, cout), jnp.float32),
                   jax.ShapeDtypeStruct((1, cout), jnp.float32),
                   jax.ShapeDtypeStruct((1, cout), jnp.float32)),
        grid=(m // tm,),
        in_specs=[pl.BlockSpec((tm, cin), lambda i: (i, 0)),
                  pl.BlockSpec((cin, cout), lambda i: (0, 0))],
        out_specs=(pl.BlockSpec((tm, cout), lambda i: (i, 0)),
                   pl.BlockSpec((1, cout), lambda i: (0, 0)),
                   pl.BlockSpec((1, cout), lambda i: (0, 0))),
        compiler_params=_cparams(("arbitrary",)),
    )(x2d, w_bf16)


def _stage2(h_sp, s_sum, s_sq, g, b, w_bf16, inv_m):
    n, hh, ww, c = h_sp.shape
    kern = functools.partial(_stage2_kernel, H=hh, W=ww, C=c, inv_m=inv_m)
    return pl.pallas_call(
        kern,
        out_shape=(jax.ShapeDtypeStruct((n, hh, ww, c), jnp.float32),
                   jax.ShapeDtypeStruct((1, c), jnp.float32),
                   jax.ShapeDtypeStruct((1, c), jnp.float32)),
        grid=(n,),
        in_specs=[pl.BlockSpec((1, hh, ww, c), lambda i: (i, 0, 0, 0)),
                  pl.BlockSpec((1, c), lambda i: (0, 0)),
                  pl.BlockSpec((1, c), lambda i: (0, 0)),
                  pl.BlockSpec((1, c), lambda i: (0, 0)),
                  pl.BlockSpec((1, c), lambda i: (0, 0)),
                  pl.BlockSpec((9, c, c), lambda i: (0, 0, 0))],
        out_specs=(pl.BlockSpec((1, hh, ww, c), lambda i: (i, 0, 0, 0)),
                   pl.BlockSpec((1, c), lambda i: (0, 0)),
                   pl.BlockSpec((1, c), lambda i: (0, 0))),
        scratch_shapes=[pltpu.VMEM((hh + 2, ww + 2, c), jnp.float32)],
        compiler_params=_cparams(("arbitrary",)),
    )(h_sp, s_sum, s_sq, g, b, w_bf16)


def _stage3(h2d, s_sum, s_sq, g, b, w_bf16, tm, inv_m):
    m, cin = h2d.shape
    cout = w_bf16.shape[1]
    kern = functools.partial(_stage3_kernel, inv_m=inv_m)
    return pl.pallas_call(
        kern,
        out_shape=(jax.ShapeDtypeStruct((m, cout), jnp.float32),
                   jax.ShapeDtypeStruct((1, cout), jnp.float32),
                   jax.ShapeDtypeStruct((1, cout), jnp.float32)),
        grid=(m // tm,),
        in_specs=[pl.BlockSpec((tm, cin), lambda i: (i, 0)),
                  pl.BlockSpec((1, cin), lambda i: (0, 0)),
                  pl.BlockSpec((1, cin), lambda i: (0, 0)),
                  pl.BlockSpec((1, cin), lambda i: (0, 0)),
                  pl.BlockSpec((1, cin), lambda i: (0, 0)),
                  pl.BlockSpec((cin, cout), lambda i: (0, 0))],
        out_specs=(pl.BlockSpec((tm, cout), lambda i: (i, 0)),
                   pl.BlockSpec((1, cout), lambda i: (0, 0)),
                   pl.BlockSpec((1, cout), lambda i: (0, 0))),
        compiler_params=_cparams(("arbitrary",)),
    )(h2d, s_sum, s_sq, g, b, w_bf16)


def _stage4(y2d, res2d, s_sum, s_sq, g, b, tm, inv_m):
    m, c = y2d.shape
    kern = functools.partial(_stage4_kernel, inv_m=inv_m)
    return pl.pallas_call(
        kern,
        out_shape=jax.ShapeDtypeStruct((m, c), jnp.float32),
        grid=(m // tm,),
        in_specs=[pl.BlockSpec((tm, c), lambda i: (i, 0)),
                  pl.BlockSpec((tm, c), lambda i: (i, 0)),
                  pl.BlockSpec((1, c), lambda i: (0, 0)),
                  pl.BlockSpec((1, c), lambda i: (0, 0)),
                  pl.BlockSpec((1, c), lambda i: (0, 0)),
                  pl.BlockSpec((1, c), lambda i: (0, 0))],
        out_specs=pl.BlockSpec((tm, c), lambda i: (i, 0)),
        compiler_params=_cparams(("parallel",)),
    )(y2d, res2d, s_sum, s_sq, g, b)


# ------------------------------ Parameters ---------------------------------

def init_params(key, inplanes, planes, base_width=64, groups=1):
    """Deterministic synthetic params in PyTorch layouts, converted to the
    matmul layouts (bf16 weights) used by the kernels."""
    width = int(planes * (base_width / 64.0)) * groups
    cout = planes * 4  # Bottleneck.expansion = 4
    ks = jax.random.split(key, 9)
    w1 = 0.2 * jax.random.normal(ks[0], (width, inplanes, 1, 1), jnp.float32)
    w2 = 0.2 * jax.random.normal(ks[1], (width, width, 3, 3), jnp.float32)
    w3 = 0.2 * jax.random.normal(ks[2], (cout, width, 1, 1), jnp.float32)
    g1 = 1.0 + 0.1 * jax.random.normal(ks[3], (width,), jnp.float32)
    b1 = 0.1 * jax.random.normal(ks[4], (width,), jnp.float32)
    g2 = 1.0 + 0.1 * jax.random.normal(ks[5], (width,), jnp.float32)
    b2 = 0.1 * jax.random.normal(ks[6], (width,), jnp.float32)
    g3 = 1.0 + 0.1 * jax.random.normal(ks[7], (cout,), jnp.float32)
    b3 = 0.1 * jax.random.normal(ks[8], (cout,), jnp.float32)

    return dict(
        # conv1x1: (out,in,1,1) -> (in,out), bf16 for the MXU
        w1m=jnp.transpose(w1.reshape(width, inplanes), (1, 0)).astype(jnp.bfloat16),
        # conv3x3: (out,in,kh,kw) -> (kh,kw,in,out) -> (9, in, out), tap = kh*3+kw
        w2m=jnp.transpose(w2, (2, 3, 1, 0)).reshape(9, width, width).astype(jnp.bfloat16),
        w3m=jnp.transpose(w3.reshape(cout, width), (1, 0)).astype(jnp.bfloat16),
        g1=g1.reshape(1, width), b1=b1.reshape(1, width),
        g2=g2.reshape(1, width), b2=b2.reshape(1, width),
        g3=g3.reshape(1, cout), b3=b3.reshape(1, cout),
        # torch-layout f32 copies for the pure-JAX reference
        _w1=w1, _w2=w2, _w3=w3,
        _g1=g1, _b1=b1, _g2=g2, _b2=b2, _g3=g3, _b3=b3,
        width=width, cout=cout,
    )


# ------------------------------ Forward pass -------------------------------

def bottleneck_forward(x_nchw, params, tile_m=512):
    """Bottleneck forward (stride=1, groups=1, dilation=1, downsample=None,
    dropout_rate=0.0 -> identity)."""
    n, cin, hh, ww = x_nchw.shape
    width, cout = params["width"], params["cout"]
    assert cin == cout, "downsample=None requires inplanes == planes*expansion"

    x_nhwc = jnp.transpose(x_nchw, (0, 2, 3, 1))
    x2d = x_nhwc.reshape(n * hh * ww, cin)
    m = n * hh * ww
    tm = _choose_tile_m(m, tile_m)
    inv_m = 1.0 / float(m)

    # conv1 (1x1) + BN1 stats (dropout p=0 -> identity)
    y1, s1_sum, s1_sq = _stage1(x2d, params["w1m"], tm)

    # bn1+relu fused into conv2 (3x3, pad 1, 9 shifted dots) + BN2 stats
    y1_sp = y1.reshape(n, hh, ww, width)
    y2_sp, s2_sum, s2_sq = _stage2(y1_sp, s1_sum, s1_sq,
                                   params["g1"], params["b1"],
                                   params["w2m"], inv_m)
    y2 = y2_sp.reshape(m, width)

    # bn2+relu fused into conv3 (1x1) + BN3 stats
    y3, s3_sum, s3_sq = _stage3(y2, s2_sum, s2_sq,
                                params["g2"], params["b2"],
                                params["w3m"], tm, inv_m)

    # bn3 + residual add + relu
    out2d = _stage4(y3, x2d, s3_sum, s3_sq, params["g3"], params["b3"], tm, inv_m)

    return jnp.transpose(out2d.reshape(n, hh, ww, cout), (0, 3, 1, 2))


# ------------------------- Pure-JAX reference (NCHW) ------------------------

def reference_forward(x, p):
    def conv(xx, w, pad):
        return jax.lax.conv_general_dilated(
            xx, w, (1, 1), pad, dimension_numbers=("NCHW", "OIHW", "NCHW"))

    def bn(h, g, b):
        mean = jnp.mean(h, axis=(0, 2, 3), keepdims=True)
        var = jnp.mean(jnp.square(h - mean), axis=(0, 2, 3), keepdims=True)
        return ((h - mean) * jax.lax.rsqrt(var + EPS)
                * g.reshape(1, -1, 1, 1) + b.reshape(1, -1, 1, 1))

    out = jax.nn.relu(bn(conv(x, p["_w1"], "VALID"), p["_g1"], p["_b1"]))
    out = jax.nn.relu(bn(conv(out, p["_w2"], ((1, 1), (1, 1))), p["_g2"], p["_b2"]))
    out = bn(conv(out, p["_w3"], "VALID"), p["_g3"], p["_b3"])
    return jax.nn.relu(out + x)


# ----------------------------------- Main -----------------------------------

if __name__ == "__main__":
    key = jax.random.PRNGKey(0)
    kx, kp = jax.random.split(key)

    # Small shapes; inplanes = planes * expansion so the identity path is valid.
    N, planes, H, W = 2, 4, 16, 16
    inplanes = planes * 4  # 16
    x = jax.random.normal(kx, (N, inplanes, H, W), jnp.float32)

    params = init_params(kp, inplanes, planes)

    out = bottleneck_forward(x, params, tile_m=128)  # M=512 -> 4 row-tiles/stage
    out = jax.block_until_ready(out)

    ref = jax.block_until_ready(reference_forward(x, params))
    np.testing.assert_allclose(np.asarray(out), np.asarray(ref), atol=5e-2, rtol=5e-2)

    print("KERNEL_OK")
</pallas_src>

<mosaic_0001>
module attributes {stable_mosaic.version = 11 : i64} {
  func.func @_stage1_kernel(%arg0: i32, %arg1: memref<128x16xf32, #tpu.memory_space<vmem>>, %arg2: memref<16x4xbf16, #tpu.memory_space<vmem>>, %arg3: memref<128x4xf32, #tpu.memory_space<vmem>>, %arg4: memref<1x4xf32, #tpu.memory_space<vmem>>, %arg5: memref<1x4xf32, #tpu.memory_space<vmem>>) attributes {dimension_semantics = [#tpu.dimension_semantics<arbitrary>], iteration_bounds = array<i64: 4>, scalar_prefetch = 0 : i64, scratch_operands = 0 : i64, tpu.core_type = #tpu.core_type<tc>, window_params = [{transform_indices = @transform_0, window_bounds = array<i64: 128, 16>}, {pipeline_mode = #tpu.pipeline_mode<synchronous>, transform_indices = @transform_1, window_bounds = array<i64: 16, 4>}, {transform_indices = @transform_2, window_bounds = array<i64: 128, 4>}, {pipeline_mode = #tpu.pipeline_mode<synchronous>, transform_indices = @transform_3, window_bounds = array<i64: 1, 4>}, {pipeline_mode = #tpu.pipeline_mode<synchronous>, transform_indices = @transform_4, window_bounds = array<i64: 1, 4>}]} {
    %c0_i32 = arith.constant 0 : i32
    %0 = arith.cmpi eq, %arg0, %c0_i32 : i32
    %1 = arith.extui %0 : i1 to i32
    %c0_i32_0 = arith.constant 0 : i32
    %2 = arith.cmpi ne, %1, %c0_i32_0 : i32
    scf.if %2 {
      %cst_16 = arith.constant 0.000000e+00 : f32
      %19 = vector.broadcast %cst_16 : f32 to vector<1x4xf32>
      %c0_17 = arith.constant 0 : index
      %c0_18 = arith.constant 0 : index
      %20 = vector.load %arg4[%c0_17, %c0_18] : memref<1x4xf32, #tpu.memory_space<vmem>>, vector<1x4xf32>
      tpu.vector_store %arg4[%c0_17, %c0_18], %19 {strides = array<i32>} : memref<1x4xf32, #tpu.memory_space<vmem>>, vector<1x4xf32>,
      %cst_19 = arith.constant 0.000000e+00 : f32
      %21 = vector.broadcast %cst_19 : f32 to vector<1x4xf32>
      %c0_20 = arith.constant 0 : index
      %c0_21 = arith.constant 0 : index
      %22 = vector.load %arg5[%c0_20, %c0_21] : memref<1x4xf32, #tpu.memory_space<vmem>>, vector<1x4xf32>
      tpu.vector_store %arg5[%c0_20, %c0_21], %21 {strides = array<i32>} : memref<1x4xf32, #tpu.memory_space<vmem>>, vector<1x4xf32>,
    } else {
    }
    %c0 = arith.constant 0 : index
    %c0_1 = arith.constant 0 : index
    %3 = vector.load %arg1[%c0, %c0_1] : memref<128x16xf32, #tpu.memory_space<vmem>>, vector<128x16xf32>
    %4 = arith.truncf %3 : vector<128x16xf32> to vector<128x16xbf16>
    %c0_2 = arith.constant 0 : index
    %c0_3 = arith.constant 0 : index
    %5 = vector.load %arg2[%c0_2, %c0_3] : memref<16x4xbf16, #tpu.memory_space<vmem>>, vector<16x4xbf16>
    %cst = arith.constant dense<0.000000e+00> : vector<128x4xf32>
    %6 = tpu.matmul %4, %5, %cst {dimension_numbers = #tpu.dot_dimension_numbers<[1], [0], [0], [1], [0, 0, 1, 1], [], []>} : vector<128x16xbf16>, vector<16x4xbf16>, vector<128x4xf32> -> vector<128x4xf32>
    %c0_4 = arith.constant 0 : index
    %c0_5 = arith.constant 0 : index
    %7 = vector.load %arg3[%c0_4, %c0_5] : memref<128x4xf32, #tpu.memory_space<vmem>>, vector<128x4xf32>
    tpu.vector_store %arg3[%c0_4, %c0_5], %6 {strides = array<i32>} : memref<128x4xf32, #tpu.memory_space<vmem>>, vector<128x4xf32>,
    %c0_6 = arith.constant 0 : index
    %c0_7 = arith.constant 0 : index
    %8 = vector.load %arg4[%c0_6, %c0_7] : memref<1x4xf32, #tpu.memory_space<vmem>>, vector<1x4xf32>
    %cst_8 = arith.constant dense<0.000000e+00> : vector<4xf32>
    %9 = vector.multi_reduction <add>, %6, %cst_8 [0] : vector<128x4xf32> to vector<4xf32>
    %10 = vector.shape_cast %9 : vector<4xf32> to vector<1x4xf32>
    %11 = arith.addf %8, %10 : vector<1x4xf32>
    %c0_9 = arith.constant 0 : index
    %c0_10 = arith.constant 0 : index
    %12 = vector.load %arg4[%c0_9, %c0_10] : memref<1x4xf32, #tpu.memory_space<vmem>>, vector<1x4xf32>
    tpu.vector_store %arg4[%c0_9, %c0_10], %11 {strides = array<i32>} : memref<1x4xf32, #tpu.memory_space<vmem>>, vector<1x4xf32>,
    %c0_11 = arith.constant 0 : index
    %c0_12 = arith.constant 0 : index
    %13 = vector.load %arg5[%c0_11, %c0_12] : memref<1x4xf32, #tpu.memory_space<vmem>>, vector<1x4xf32>
    %14 = arith.mulf %6, %6 : vector<128x4xf32>
    %cst_13 = arith.constant dense<0.000000e+00> : vector<4xf32>
    %15 = vector.multi_reduction <add>, %14, %cst_13 [0] : vector<128x4xf32> to vector<4xf32>
    %16 = vector.shape_cast %15 : vector<4xf32> to vector<1x4xf32>
    %17 = arith.addf %13, %16 : vector<1x4xf32>
    %c0_14 = arith.constant 0 : index
    %c0_15 = arith.constant 0 : index
    %18 = vector.load %arg5[%c0_14, %c0_15] : memref<1x4xf32, #tpu.memory_space<vmem>>, vector<1x4xf32>
    tpu.vector_store %arg5[%c0_14, %c0_15], %17 {strides = array<i32>} : memref<1x4xf32, #tpu.memory_space<vmem>>, vector<1x4xf32>,
    return
  }
  func.func @transform_0(%arg0: i32) -> (i32, i32) {
    %c0_i32 = arith.constant 0 : i32
    %c0_i32_0 = arith.constant 0 : i32
    return %arg0, %c0_i32 : i32, i32
  }
  func.func @transform_1(%arg0: i32) -> (i32, i32) {
    %c0_i32 = arith.constant 0 : i32
    %c0_i32_0 = arith.constant 0 : i32
    %c0_i32_1 = arith.constant 0 : i32
    return %c0_i32, %c0_i32_0 : i32, i32
  }
  func.func @transform_2(%arg0: i32) -> (i32, i32) {
    %c0_i32 = arith.constant 0 : i32
    %c0_i32_0 = arith.constant 0 : i32
    return %arg0, %c0_i32 : i32, i32
  }
  func.func @transform_3(%arg0: i32) -> (i32, i32) {
    %c0_i32 = arith.constant 0 : i32
    %c0_i32_0 = arith.constant 0 : i32
    %c0_i32_1 = arith.constant 0 : i32
    return %c0_i32, %c0_i32_0 : i32, i32
  }
  func.func @transform_4(%arg0: i32) -> (i32, i32) {
    %c0_i32 = arith.constant 0 : i32
    %c0_i32_0 = arith.constant 0 : i32
    %c0_i32_1 = arith.constant 0 : i32
    return %c0_i32, %c0_i32_0 : i32, i32
  }
}

</mosaic_0001>

<llo_original>
// kernel: tpu_custom_call.1
$region0: #{tpu_custom_call.1}
  #allocation0 [shape = 'u32[]', space=smem, size = 0x4, offset = 0x4, fixed_abs, tag = 'smem constant byte address 0x4 - core index']
  #allocation1 [shape = 'u32[144,128]{1,0:T(1,128)}', space=vmem, size = 0x12000, scoped, tag = 'internal scratch']
  %s0 = inlined_call_operand.vmem [shape: f32[512,16], index: 0, kind: input, shape index: {}]
  %s1 = inlined_call_operand.vmem [shape: bf16[16,4], index: 1, kind: input, shape index: {}]
  %s2 = inlined_call_operand.vmem [shape: f32[512,4], index: 2, kind: output, shape index: {0}]
  %s3 = inlined_call_operand.hbm [shape: f32[1,4], index: 3, kind: output, shape index: {1}]
  %s4 = inlined_call_operand.hbm [shape: f32[1,4], index: 4, kind: output, shape index: {2}]
  %5 = xla_tuple %s2, %s3, %s4
  %s6 = sld [smem:[#allocation0]]
  $region61: #{tpu_custom_call.1} parent=0
    _
  %s8 = ssub.s32 1, %s6
  %s9 = scalar_select 0, %s8, %s6
  $region1: #{tpu_custom_call.1} parent=0
    #allocation2 [shape = 'u8[512]{0}', space=vmem, size = 0x400, scoped, tag = 'output window, operand 1, single buffered']
    #allocation3 [shape = 's32[2]{0}', space=sflag, size = 0x8, scoped, tag = 'scoped memory for tpu_custom_call.1']
    #allocation4 [shape = 'u8[512]{0}', space=vmem, size = 0x400, scoped, tag = 'output window, operand 2, single buffered']
    #allocation5 [shape = 's32[1]{0}', space=sflag, size = 0x4, scoped, tag = 'scoped memory for tpu_custom_call.1']
    %10 = vsyncpa [#allocation3], 0
    %11 = vsyncpa [#allocation5], 0
    loop: start=0, step=1, limit=6
    $region2: #{tpu_custom_call.1} parent=1 // loop_pre_header
      _
    $region3: #{tpu_custom_call.1} parent=1 // loop_header
      %s13 = sphi 0, %s17
      %p14 = scmp.ge.s32.totalorder %s13, 6
      %s23 = sphi 0, %s25
      %s26 = sphi 0, %s23
      %s27 = sphi 0, %s26
      %s43 = sphi 0, %s27
      %s47 = sphi 0, %s47
      %s49 = sphi 0, %s47
      %s50 = sphi 0, %s49
      %s64 = sphi 0, %s50
      %s70 = sphi 0, %s72
      %s73 = sphi 0, %s70
      %s74 = sphi 0, %s73
      %s90 = sphi 0, %s74
      %s94 = sphi 0, %s94
      %s96 = sphi 0, %s94
      %s97 = sphi 0, %s96
      %s111 = sphi 0, %s97
      %s115 = sphi 0, %s115
      %s117 = sphi 0, %s115
      %s118 = sphi 0, %s117
      %s132 = sphi 0, %s118
    $region4: #{tpu_custom_call.1} parent=1 // loop_header_branch
      %16 = sbr.rel (%p14) target = $region8
    $region5: #{tpu_custom_call.1} parent=1 // loop_body
      %s18 = ssub.s32 %s13, 1
      %s19 = ssub.s32 %s13, 2
      %s20 = sadd.s32 %s13, 1
      %s21 = ssub.s32 %s13, %s20
      %p22 = scmp.eq.s32.totalorder %s21, 0
      %s24 = sadd.s32 %s23, 1
      %s25 = scalar_select %p22, %s23, %s24
      %p28 = pneg %p22
      %p29 = scmp.eq.s32.totalorder %s13, 3
      %p30 = por %p28, %p29
      %p31 = scmp.ne.s32.totalorder %s23, %s26
      %p32 = scmp.eq.s32.totalorder %s13, 0
      %p33 = por %p31, %p32
      %p34 = scmp.ne.s32.totalorder %s23, %s26
      %p35 = scmp.eq.s32.totalorder %s18, 3
      %p36 = por %p34, %p35
      %p37 = scmp.ne.s32.totalorder %s26, %s27
      %p38 = scmp.eq.s32.totalorder %s18, 0
      %p39 = por %p37, %p38
      %p40 = scmp.ne.s32.totalorder %s26, %s27
      %p41 = scmp.eq.s32.totalorder %s19, 3
      %p42 = por %p40, %p41
      %p44 = scmp.ne.s32.totalorder %s27, %s43
      %p45 = scmp.eq.s32.totalorder %s19, 0
      %p46 = por %p44, %p45
      %s48 = sadd.s32 %s47, 1
      %p51 = scmp.eq.s32.totalorder %s13, 3
      %p52 = scmp.ne.s32.totalorder %s47, %s49
      %p53 = scmp.eq.s32.totalorder %s13, 0
      %p54 = por %p52, %p53
      %p55 = scmp.ne.s32.totalorder %s47, %s49
      %p56 = scmp.eq.s32.totalorder %s18, 3
      %p57 = por %p55, %p56
      %p58 = scmp.ne.s32.totalorder %s49, %s50
      %p59 = scmp.eq.s32.totalorder %s18, 0
      %p60 = por %p58, %p59
      %p61 = scmp.ne.s32.totalorder %s49, %s50
      %p62 = scmp.eq.s32.totalorder %s19, 3
      %p63 = por %p61, %p62
      %p65 = scmp.ne.s32.totalorder %s50, %s64
      %p66 = scmp.eq.s32.totalorder %s19, 0
      %p67 = por %p65, %p66
      %s68 = ssub.s32 %s13, %s20
      %p69 = scmp.eq.s32.totalorder %s68, 0
      %s71 = sadd.s32 %s70, 1
      %s72 = scalar_select %p69, %s70, %s71
      %p75 = pneg %p69
      %p76 = scmp.eq.s32.totalorder %s13, 3
      %p77 = por %p75, %p76
      %p78 = scmp.ne.s32.totalorder %s70, %s73
      %p79 = scmp.eq.s32.totalorder %s13, 0
      %p80 = por %p78, %p79
      %p81 = scmp.ne.s32.totalorder %s70, %s73
      %p82 = scmp.eq.s32.totalorder %s18, 3
      %p83 = por %p81, %p82
      %p84 = scmp.ne.s32.totalorder %s73, %s74
      %p85 = scmp.eq.s32.totalorder %s18, 0
      %p86 = por %p84, %p85
      %p87 = scmp.ne.s32.totalorder %s73, %s74
      %p88 = scmp.eq.s32.totalorder %s19, 3
      %p89 = por %p87, %p88
      %p91 = scmp.ne.s32.totalorder %s74, %s90
      %p92 = scmp.eq.s32.totalorder %s19, 0
      %p93 = por %p91, %p92
      %s95 = sadd.s32 %s94, 1
      %p98 = scmp.eq.s32.totalorder %s13, 3
      %p99 = scmp.ne.s32.totalorder %s94, %s96
      %p100 = scmp.eq.s32.totalorder %s13, 0
      %p101 = por %p99, %p100
      %p102 = scmp.ne.s32.totalorder %s94, %s96
      %p103 = scmp.eq.s32.totalorder %s18, 3
      %p104 = por %p102, %p103
      %p105 = scmp.ne.s32.totalorder %s96, %s97
      %p106 = scmp.eq.s32.totalorder %s18, 0
      %p107 = por %p105, %p106
      %p108 = scmp.ne.s32.totalorder %s96, %s97
      %p109 = scmp.eq.s32.totalorder %s19, 3
      %p110 = por %p108, %p109
      %p112 = scmp.ne.s32.totalorder %s97, %s111
      %p113 = scmp.eq.s32.totalorder %s19, 0
      %p114 = por %p112, %p113
      %s116 = sadd.s32 %s115, 1
      %p119 = scmp.eq.s32.totalorder %s13, 3
      %p120 = scmp.ne.s32.totalorder %s115, %s117
      %p121 = scmp.eq.s32.totalorder %s13, 0
      %p122 = por %p120, %p121
      %p123 = scmp.ne.s32.totalorder %s115, %s117
      %p124 = scmp.eq.s32.totalorder %s18, 3
      %p125 = por %p123, %p124
      %p126 = scmp.ne.s32.totalorder %s117, %s118
      %p127 = scmp.eq.s32.totalorder %s18, 0
      %p128 = por %p126, %p127
      %p129 = scmp.ne.s32.totalorder %s117, %s118
      %p130 = scmp.eq.s32.totalorder %s19, 3
      %p131 = por %p129, %p130
      %p133 = scmp.ne.s32.totalorder %s118, %s132
      %p134 = scmp.eq.s32.totalorder %s19, 0
      %p135 = por %p133, %p134
      %p136 = scmp.le.s32.totalorder 1, %s13
      %p137 = scmp.lt.s32.totalorder %s13, 5
      %p138 = pnand %p136, %p137
      %p139 = pneg %p138
      // Predicated region
      $region9: #{tpu_custom_call.1} parent=5 // pred_check
        _
      $region10: #{tpu_custom_call.1} parent=5 // pred_check_branch
        %141 = sbr.rel (%p138) target = $region12
      $region11: #{tpu_custom_call.1} parent=5 // pred_region
        %s142 = ssub.s32 %s13, 1
        // Predicated region
        $region13: #{tpu_custom_call.1} parent=11 // pred_check
          %p143 = pneg %p60
        $region14: #{tpu_custom_call.1} parent=11 // pred_check_branch
          %145 = sbr.rel (%p143) target = $region16
        $region15: #{tpu_custom_call.1} parent=11 // pred_region
          _
        $region16: #{tpu_custom_call.1} parent=11 // pred_fallthru
          _
      $region12: #{tpu_custom_call.1} parent=5 // pred_fallthru
        _
      %p146 = scmp.lt.s32.totalorder %s13, 4
      // Predicated region
      $region17: #{tpu_custom_call.1} parent=5 // pred_check
        %p147 = pneg %p146
      $region18: #{tpu_custom_call.1} parent=5 // pred_check_branch
        %149 = sbr.rel (%p147) target = $region20
      $region19: #{tpu_custom_call.1} parent=5 // pred_region
        // Predicated region
        $region21: #{tpu_custom_call.1} parent=19 // pred_check
          %p150 = pneg %p33
        $region22: #{tpu_custom_call.1} parent=19 // pred_check_branch
          %152 = sbr.rel (%p150) target = $region24
        $region23: #{tpu_custom_call.1} parent=19 // pred_region
          %s153 = smul.u32 16, %s13
          %p154 = scmp.lt.s32.totalorder %s153, 63
          %s155 = scalar_select %p154, %s153, 63
          %s156 = smul.addr %s155, 8
          %s157 = scalar_lea.vmem %s0, %s156
          %s158 = smul.u32 16, %s13
        $region24: #{tpu_custom_call.1} parent=19 // pred_fallthru
          _
      $region20: #{tpu_custom_call.1} parent=5 // pred_fallthru
        _
      %p159 = scmp.le.s32.totalorder 1, %s13
      %p160 = scmp.lt.s32.totalorder %s13, 5
      %p161 = pnand %p159, %p160
      %p162 = pneg %p161
      // Predicated region
      $region25: #{tpu_custom_call.1} parent=5 // pred_check
        _
      $region26: #{tpu_custom_call.1} parent=5 // pred_check_branch
        %164 = sbr.rel (%p161) target = $region28
      $region27: #{tpu_custom_call.1} parent=5 // pred_region
        %s165 = ssub.s32 %s13, 1
        %s166 = smul.u32 16, %s18
        %p167 = scmp.lt.s32.totalorder %s166, 63
        %s168 = scalar_select %p167, %s166, 63
        %s169 = smul.addr %s168, 8
        %s170 = scalar_lea.vmem %s0, %s169
        %p171 = pneg %p39
        %p172 = pneg %p36
        %p173 = pneg %p60
        %p174 = pneg %p57
        %p175 = pneg %p86
        %p176 = pneg %p83
        %s177 = smul.u32 16, %s18
        %p178 = scmp.lt.s32.totalorder %s177, 63
        %s179 = scalar_select %p178, %s177, 63
        %s180 = smul.addr %s179, 8
        %s181 = scalar_lea.vmem %s2, %s180
        %p182 = pneg %p107
        %p183 = pneg %p104
        %p184 = pneg %p128
        %p185 = pneg %p125
        %s186 = smul.u32 16, %s18
        %p187 = scmp.lt.s32.totalorder %s186, 63
        %s188 = scalar_select %p187, %s186, 63
        %s189 = smul.addr %s188, 8
        %s190 = scalar_lea.vmem %s0, %s189
        %s191 = smul.u32 16, %s18
        %s192 = smul.u32 16, %s18
        %p193 = scmp.lt.s32.totalorder %s192, 63
        %s194 = scalar_select %p193, %s192, 63
        %s195 = smul.addr %s194, 8
        %s196 = scalar_lea.vmem %s2, %s195
        %s197 = smul.u32 16, %s18
        %p199 = scmp.eq.s32.totalorder %s18, 0
        // Predicated region
        $region29: #{tpu_custom_call.1} parent=27 // pred_check
          %p200 = pneg %p199
        $region30: #{tpu_custom_call.1} parent=27 // pred_check_branch
          %202 = sbr.rel (%p200) target = $region32
        $region31: #{tpu_custom_call.1} parent=27 // pred_region
          %vm203 = vcmask 24576
          %204 = vst.msk [vmem:[#allocation2] sm:$0x1] %vm203, 0.0
          %205 = vst.msk [vmem:[#allocation4] sm:$0x1] %vm203, 0.0
        $region32: #{tpu_custom_call.1} parent=27 // pred_fallthru
          _
        %v206 = vld [vmem:[%s190] sm:$0xff]
        %v207 = vld [vmem:[%s190 + $0x8] sm:$0xff]
        %v208 = vld [vmem:[%s190 + $0x10] sm:$0xff]
        %v209 = vld [vmem:[%s190 + $0x18] sm:$0xff]
        %v210 = vld [vmem:[%s190 + $0x20] sm:$0xff]
        %v211 = vld [vmem:[%s190 + $0x28] sm:$0xff]
        %v212 = vld [vmem:[%s190 + $0x30] sm:$0xff]
        %v213 = vld [vmem:[%s190 + $0x38] sm:$0xff]
        %v214 = vld [vmem:[%s190 + $0x40] sm:$0xff]
        %v215 = vld [vmem:[%s190 + $0x48] sm:$0xff]
        %v216 = vld [vmem:[%s190 + $0x50] sm:$0xff]
        %v217 = vld [vmem:[%s190 + $0x58] sm:$0xff]
        %v218 = vld [vmem:[%s190 + $0x60] sm:$0xff]
        %v219 = vld [vmem:[%s190 + $0x68] sm:$0xff]
        %v220 = vld [vmem:[%s190 + $0x70] sm:$0xff]
        %v221 = vld [vmem:[%s190 + $0x78] sm:$0xff]
        %v222 = vpack.c.bf16 %v207, %v206
        %v223 = vpack.c.bf16 %v209, %v208
        %v224 = vpack.c.bf16 %v211, %v210
        %v225 = vpack.c.bf16 %v213, %v212
        %v226 = vpack.c.bf16 %v215, %v214
        %v227 = vpack.c.bf16 %v217, %v216
        %v228 = vpack.c.bf16 %v219, %v218
        %v229 = vpack.c.bf16 %v221, %v220
        %v230 = vld [vmem:[%s1] sm:$0xf]
        %v231 = vld [vmem:[%s1 + $0x4] sm:$0xf]
        %v234 = vunpack.c.l.b16 %v230
        %v235 = vunpack.c.l.b16 %v231
        %v236 = vpack.c.b16 %v235, %v234
        %vm238 = vcmask 130048
        %v240 = vsel %vm238, %v222, 0
        %v243 = vsel %vm238, %v223, 0
        %v246 = vsel %vm238, %v224, 0
        %v249 = vsel %vm238, %v225, 0
        %v252 = vsel %vm238, %v226, 0
        %v255 = vsel %vm238, %v227, 0
        %v258 = vsel %vm238, %v228, 0
        %v261 = vsel %vm238, %v229, 0
        %263 = vmatprep.subr.bf16.mxu0 0
        %264 = vmatpush1.bf16.msra.mxu0 %v236
        %265 = vmatprep.subr.bf16.mxu0 0
        %266 = vmatpush1.bf16.msra.mxu0 0
        %267 = vmatprep.subr.bf16.mxu0 0
        %268 = vmatpush1.bf16.msra.mxu0 0
        %269 = vmatprep.subr.bf16.mxu0 0
        %270 = vmatpush1.bf16.msra.mxu0 0
        %271 = vmatprep.subr.bf16.mxu0 0
        %272 = vmatpush1.bf16.msra.mxu0 0
        %273 = vmatprep.subr.bf16.mxu0 0
        %274 = vmatpush1.bf16.msra.mxu0 0
        %275 = vmatprep.subr.bf16.mxu0 0
        %276 = vmatpush1.bf16.msra.mxu0 0
        %277 = vmatprep.subr.bf16.mxu0 0
        %278 = vmatpush1.bf16.msra.mxu0 0
        %279 = vmatprep.subr.bf16.mxu0 0
        %280 = vmatpush1.bf16.msra.mxu0 0
        %281 = vmatprep.subr.bf16.mxu0 0
        %282 = vmatpush1.bf16.msra.mxu0 0
        %283 = vmatprep.subr.bf16.mxu0 0
        %284 = vmatpush1.bf16.msra.mxu0 0
        %285 = vmatprep.subr.bf16.mxu0 0
        %286 = vmatpush1.bf16.msra.mxu0 0
        %287 = vmatprep.subr.bf16.mxu0 0
        %288 = vmatpush1.bf16.msra.mxu0 0
        %289 = vmatprep.subr.bf16.mxu0 0
        %290 = vmatpush1.bf16.msra.mxu0 0
        %291 = vmatprep.subr.bf16.mxu0 0
        %292 = vmatpush1.bf16.msra.mxu0 0
        %293 = vmatprep.subr.bf16.mxu0 0
        %294 = vmatpush1.bf16.msra.mxu0 0
        %295 = vmatprep.mubr.bf16.mxu0 0
        %296 = vmatmul.mubr.bf16.gmra.mrb[0].mxu0 %v240
        %v297 = vpop.f32.mrb[0].mxu0
        %v298 = vadd.f32 0.0, %v297
        %v299 = vpop.f32.mrb[0].mxu0
        %v300 = vpop.f32.mrb[0].mxu0
        %v301 = vadd.f32 0.0, %v300
        %v302 = vpop.f32.mrb[0].mxu0
        %303 = vmatprep.mubr.bf16.mxu0 0
        %304 = vmatmul.mubr.bf16.gmra.mrb[0].mxu0 %v243
        %v305 = vpop.f32.mrb[0].mxu0
        %v306 = vadd.f32 0.0, %v305
        %v307 = vpop.f32.mrb[0].mxu0
        %v308 = vpop.f32.mrb[0].mxu0
        %v309 = vadd.f32 0.0, %v308
        %v310 = vpop.f32.mrb[0].mxu0
        %311 = vmatprep.mubr.bf16.mxu0 0
        %312 = vmatmul.mubr.bf16.gmra.mrb[0].mxu0 %v246
        %v313 = vpop.f32.mrb[0].mxu0
        %v314 = vadd.f32 0.0, %v313
        %v315 = vpop.f32.mrb[0].mxu0
        %v316 = vpop.f32.mrb[0].mxu0
        %v317 = vadd.f32 0.0, %v316
        %v318 = vpop.f32.mrb[0].mxu0
        %319 = vmatprep.mubr.bf16.mxu0 0
        %320 = vmatmul.mubr.bf16.gmra.mrb[0].mxu0 %v249
        %v321 = vpop.f32.mrb[0].mxu0
        %v322 = vadd.f32 0.0, %v321
        %v323 = vpop.f32.mrb[0].mxu0
        %v324 = vpop.f32.mrb[0].mxu0
        %v325 = vadd.f32 0.0, %v324
        %v326 = vpop.f32.mrb[0].mxu0
        %327 = vmatprep.mubr.bf16.mxu0 0
        %328 = vmatmul.mubr.bf16.gmra.mrb[0].mxu0 %v252
        %v329 = vpop.f32.mrb[0].mxu0
        %v330 = vadd.f32 0.0, %v329
        %v331 = vpop.f32.mrb[0].mxu0
        %v332 = vpop.f32.mrb[0].mxu0
        %v333 = vadd.f32 0.0, %v332
        %v334 = vpop.f32.mrb[0].mxu0
        %335 = vmatprep.mubr.bf16.mxu0 0
        %336 = vmatmul.mubr.bf16.gmra.mrb[0].mxu0 %v255
        %v337 = vpop.f32.mrb[0].mxu0
        %v338 = vadd.f32 0.0, %v337
        %v339 = vpop.f32.mrb[0].mxu0
        %v340 = vpop.f32.mrb[0].mxu0
        %v341 = vadd.f32 0.0, %v340
        %v342 = vpop.f32.mrb[0].mxu0
        %343 = vmatprep.mubr.bf16.mxu0 0
        %344 = vmatmul.mubr.bf16.gmra.mrb[0].mxu0 %v258
        %v345 = vpop.f32.mrb[0].mxu0
        %v346 = vadd.f32 0.0, %v345
        %v347 = vpop.f32.mrb[0].mxu0
        %v348 = vpop.f32.mrb[0].mxu0
        %v349 = vadd.f32 0.0, %v348
        %v350 = vpop.f32.mrb[0].mxu0
        %351 = vmatprep.mubr.bf16.mxu0 0
        %352 = vmatmul.mubr.bf16.gmra.mrb[0].mxu0 %v261
        %v353 = vpop.f32.mrb[0].mxu0
        %v354 = vadd.f32 0.0, %v353
        %v355 = vpop.f32.mrb[0].mxu0
        %v356 = vpop.f32.mrb[0].mxu0
        %v357 = vadd.f32 0.0, %v356
        %v358 = vpop.f32.mrb[0].mxu0
        %359 = vdwg.mxu0
        %vm360 = vcmask 31744
        %361 = vst.msk [vmem:[%s196] sm:$0xff] %vm360, %v298
        %362 = vst.msk [vmem:[%s196 + $0x8] sm:$0xff] %vm360, %v301
        %363 = vst.msk [vmem:[%s196 + $0x10] sm:$0xff] %vm360, %v306
        %364 = vst.msk [vmem:[%s196 + $0x18] sm:$0xff] %vm360, %v309
        %365 = vst.msk [vmem:[%s196 + $0x20] sm:$0xff] %vm360, %v314
        %366 = vst.msk [vmem:[%s196 + $0x28] sm:$0xff] %vm360, %v317
        %367 = vst.msk [vmem:[%s196 + $0x30] sm:$0xff] %vm360, %v322
        %368 = vst.msk [vmem:[%s196 + $0x38] sm:$0xff] %vm360, %v325
        %369 = vst.msk [vmem:[%s196 + $0x40] sm:$0xff] %vm360, %v330
        %370 = vst.msk [vmem:[%s196 + $0x48] sm:$0xff] %vm360, %v333
        %371 = vst.msk [vmem:[%s196 + $0x50] sm:$0xff] %vm360, %v338
        %372 = vst.msk [vmem:[%s196 + $0x58] sm:$0xff] %vm360, %v341
        %373 = vst.msk [vmem:[%s196 + $0x60] sm:$0xff] %vm360, %v346
        %374 = vst.msk [vmem:[%s196 + $0x68] sm:$0xff] %vm360, %v349
        %375 = vst.msk [vmem:[%s196 + $0x70] sm:$0xff] %vm360, %v354
        %376 = vst.msk [vmem:[%s196 + $0x78] sm:$0xff] %vm360, %v357
        %v377 = vld [vmem:[#allocation2] sm:$0x1]
        %v378 = vsel %vm360, %v298, 0.0
        %v379 = vsel %vm360, %v301, 0.0
        %v380 = vadd.f32 %v378, %v379
        %v381 = vsel %vm360, %v306, 0.0
        %v382 = vadd.f32 %v380, %v381
        %v383 = vsel %vm360, %v309, 0.0
        %v384 = vadd.f32 %v382, %v383
        %v385 = vsel %vm360, %v314, 0.0
        %v386 = vadd.f32 %v384, %v385
        %v387 = vsel %vm360, %v317, 0.0
        %v388 = vadd.f32 %v386, %v387
        %v389 = vsel %vm360, %v322, 0.0
        %v390 = vadd.f32 %v388, %v389
        %v391 = vsel %vm360, %v325, 0.0
        %v392 = vadd.f32 %v390, %v391
        %v393 = vsel %vm360, %v330, 0.0
        %v394 = vadd.f32 %v392, %v393
        %v395 = vsel %vm360, %v333, 0.0
        %v396 = vadd.f32 %v394, %v395
        %v397 = vsel %vm360, %v338, 0.0
        %v398 = vadd.f32 %v396, %v397
        %v399 = vsel %vm360, %v341, 0.0
        %v400 = vadd.f32 %v398, %v399
        %v401 = vsel %vm360, %v346, 0.0
        %v402 = vadd.f32 %v400, %v401
        %v403 = vsel %vm360, %v349, 0.0
        %v404 = vadd.f32 %v402, %v403
        %v405 = vsel %vm360, %v354, 0.0
        %v406 = vadd.f32 %v404, %v405
        %v407 = vsel %vm360, %v357, 0.0
        %v408 = vadd.f32 %v406, %v407
        %v409 = vrot.slane %v408, 4
        %v410 = vadd.f32 %v408, %v409
        %v411 = vrot.slane %v410, 2
        %v412 = vadd.f32 %v410, %v411
        %v413 = vrot.slane %v412, 1
        %v414 = vadd.f32 %v412, %v413
        %v415 = vadd.f32 %v377, %v414
        %vm416 = vcmask 24576
        %417 = vst.msk [vmem:[#allocation2] sm:$0x1] %vm416, %v415
        %v418 = vld [vmem:[#allocation4] sm:$0x1]
        %v419 = vmul.f32 %v298, %v298
        %v420 = vmul.f32 %v301, %v301
        %v421 = vmul.f32 %v306, %v306
        %v422 = vmul.f32 %v309, %v309
        %v423 = vmul.f32 %v314, %v314
        %v424 = vmul.f32 %v317, %v317
        %v425 = vmul.f32 %v322, %v322
        %v426 = vmul.f32 %v325, %v325
        %v427 = vmul.f32 %v330, %v330
        %v428 = vmul.f32 %v333, %v333
        %v429 = vmul.f32 %v338, %v338
        %v430 = vmul.f32 %v341, %v341
        %v431 = vmul.f32 %v346, %v346
        %v432 = vmul.f32 %v349, %v349
        %v433 = vmul.f32 %v354, %v354
        %v434 = vmul.f32 %v357, %v357
        %v435 = vsel %vm360, %v419, 0.0
        %v436 = vsel %vm360, %v420, 0.0
        %v437 = vadd.f32 %v435, %v436
        %v438 = vsel %vm360, %v421, 0.0
        %v439 = vadd.f32 %v437, %v438
        %v440 = vsel %vm360, %v422, 0.0
        %v441 = vadd.f32 %v439, %v440
        %v442 = vsel %vm360, %v423, 0.0
        %v443 = vadd.f32 %v441, %v442
        %v444 = vsel %vm360, %v424, 0.0
        %v445 = vadd.f32 %v443, %v444
        %v446 = vsel %vm360, %v425, 0.0
        %v447 = vadd.f32 %v445, %v446
        %v448 = vsel %vm360, %v426, 0.0
        %v449 = vadd.f32 %v447, %v448
        %v450 = vsel %vm360, %v427, 0.0
        %v451 = vadd.f32 %v449, %v450
        %v452 = vsel %vm360, %v428, 0.0
        %v453 = vadd.f32 %v451, %v452
        %v454 = vsel %vm360, %v429, 0.0
        %v455 = vadd.f32 %v453, %v454
        %v456 = vsel %vm360, %v430, 0.0
        %v457 = vadd.f32 %v455, %v456
        %v458 = vsel %vm360, %v431, 0.0
        %v459 = vadd.f32 %v457, %v458
        %v460 = vsel %vm360, %v432, 0.0
        %v461 = vadd.f32 %v459, %v460
        %v462 = vsel %vm360, %v433, 0.0
        %v463 = vadd.f32 %v461, %v462
        %v464 = vsel %vm360, %v434, 0.0
        %v465 = vadd.f32 %v463, %v464
        %v466 = vrot.slane %v465, 4
        %v467 = vadd.f32 %v465, %v466
        %v468 = vrot.slane %v467, 2
        %v469 = vadd.f32 %v467, %v468
        %v470 = vrot.slane %v469, 1
        %v471 = vadd.f32 %v469, %v470
        %v472 = vadd.f32 %v418, %v471
        %473 = vst.msk [vmem:[#allocation4] sm:$0x1] %vm416, %v472
        %s474 = smul.u32 16, %s18
        %p475 = scmp.lt.s32.totalorder %s474, 63
        %s476 = scalar_select %p475, %s474, 63
        %s477 = smul.addr %s476, 8
        %s478 = scalar_lea.vmem %s2, %s477
        // Predicated region
        $region33: #{tpu_custom_call.1} parent=27 // pred_check
          %p479 = pneg %p83
        $region34: #{tpu_custom_call.1} parent=27 // pred_check_branch
          %481 = sbr.rel (%p479) target = $region36
        $region35: #{tpu_custom_call.1} parent=27 // pred_region
          %s482 = smul.u32 16, %s18
        $region36: #{tpu_custom_call.1} parent=27 // pred_fallthru
          _
        // Predicated region
        $region37: #{tpu_custom_call.1} parent=27 // pred_check
          %p483 = pneg %p104
        $region38: #{tpu_custom_call.1} parent=27 // pred_check_branch
          %485 = sbr.rel (%p483) target = $region40
        $region39: #{tpu_custom_call.1} parent=27 // pred_region
          %s487 = ssub.s32 16, 16
          %488 = vsyncadd [#allocation3], %s487
          %s490 = sshll.u32 [#allocation2], 4
          %s491 = int_to_ptr.vmem [resolvable:$true] %s490
          %493 = dma.vmem_to_hbm [thread:$0]  %s491, 16, %s3, [#allocation3]
        $region40: #{tpu_custom_call.1} parent=27 // pred_fallthru
          _
        // Predicated region
        $region41: #{tpu_custom_call.1} parent=27 // pred_check
          %p494 = pneg %p125
        $region42: #{tpu_custom_call.1} parent=27 // pred_check_branch
          %496 = sbr.rel (%p494) target = $region44
        $region43: #{tpu_custom_call.1} parent=27 // pred_region
          %s498 = ssub.s32 16, 16
          %499 = vsyncadd [#allocation5], %s498
          %s501 = sshll.u32 [#allocation4], 4
          %s502 = int_to_ptr.vmem [resolvable:$true] %s501
          %504 = dma.vmem_to_hbm [thread:$0]  %s502, 16, %s4, [#allocation5]
        $region44: #{tpu_custom_call.1} parent=27 // pred_fallthru
          _
        // Predicated region
        $region45: #{tpu_custom_call.1} parent=27 // pred_check
          %p505 = pneg %p104
        $region46: #{tpu_custom_call.1} parent=27 // pred_check_branch
          %507 = sbr.rel (%p505) target = $region48
        $region47: #{tpu_custom_call.1} parent=27 // pred_region
          %508 = dma.done [#allocation3], 16
        $region48: #{tpu_custom_call.1} parent=27 // pred_fallthru
          _
        // Predicated region
        $region49: #{tpu_custom_call.1} parent=27 // pred_check
          %p509 = pneg %p125
        $region50: #{tpu_custom_call.1} parent=27 // pred_check_branch
          %511 = sbr.rel (%p509) target = $region52
        $region51: #{tpu_custom_call.1} parent=27 // pred_region
          %512 = dma.done [#allocation5], 16
        $region52: #{tpu_custom_call.1} parent=27 // pred_fallthru
          _
      $region28: #{tpu_custom_call.1} parent=5 // pred_fallthru
        _
      %p513 = scmp.le.s32.totalorder 2, %s13
      // Predicated region
      $region53: #{tpu_custom_call.1} parent=5 // pred_check
        %p514 = pneg %p513
      $region54: #{tpu_custom_call.1} parent=5 // pred_check_branch
        %516 = sbr.rel (%p514) target = $region56
      $region55: #{tpu_custom_call.1} parent=5 // pred_region
        %s517 = ssub.s32 %s13, 2
        // Predicated region
        $region57: #{tpu_custom_call.1} parent=55 // pred_check
          %p518 = pneg %p89
        $region58: #{tpu_custom_call.1} parent=55 // pred_check_branch
          %520 = sbr.rel (%p518) target = $region60
        $region59: #{tpu_custom_call.1} parent=55 // pred_region
          %s521 = smul.u32 16, %s19
          %p522 = scmp.lt.s32.totalorder %s521, 63
          %s523 = scalar_select %p522, %s521, 63
          %s524 = smul.addr %s523, 8
          %s525 = scalar_lea.vmem %s2, %s524
        $region60: #{tpu_custom_call.1} parent=55 // pred_fallthru
          _
      $region56: #{tpu_custom_call.1} parent=5 // pred_fallthru
        _
    $region6: #{tpu_custom_call.1} parent=1 // loop_footer
      %s17 = sadd.s32 1, %s13
    $region7: #{tpu_custom_call.1} parent=1 // loop_footer_branch
      %12 = sbr.rel target = $region3
    $region8: #{tpu_custom_call.1} parent=1 // loop_exit
      _
    %526 = vsyncpa [#allocation3], 1
    %s527 = scalar_lea.sflag [#allocation3], 1
    %528 = vsyncpa %s527, 1
    %529 = vsyncpa [#allocation5], 1

</llo_original>
